<compile_context>
chip_gen: v5e
topology: v5e:2x2
jax: 0.10.0
libtpu: 0.0.40
codegen_flags: <defaults>
</compile_context>

<pallas_src>
import functools

import jax
import jax.numpy as jnp
from jax.experimental import pallas as pl
from jax.experimental.pallas import tpu as pltpu

# ---------------- toy problem sizes (consistent with the S3D tail) --------
N = 2            # batch
C_IN = 16        # channels entering avgpool (1024 in real S3D)
T = 4            # temporal frames entering avgpool
H = W = 7        # spatial size entering avgpool (matches pool kernel (2,7,7))
HW = H * W
T_OUT = T - 2 + 1            # AvgPool3d kernel_size=(2,7,7), stride=1, pad=0
DIM_FEAT = 32    # classifier Conv3d out_channels (400 in real S3D)
NUM_CLASSES = 8  # fc_last out_features

LANE = 128


def _round_up(v, m):
    return (v + m - 1) // m * m


def _wrapper_v6_kernel(x_ref, wred_ref, wc_ref, bc_ref, wl_ref, bl_ref,
                       out_ref, feat_ref):
    """One batch block per grid step.

    x_ref    : (bn, C_IN, T*HW)        pre-avgpool feature map, native NCDHW order
    wred_ref : (1, 1, T*HW)   f32      fused avgpool+temporal-mean weights
    wc_ref   : (C_IN, DF_PAD)          conv3d 1x1x1 weight, transposed, 0-padded
    bc_ref   : (1, DF_PAD)    f32      conv3d bias, 0-padded
    wl_ref   : (DF_PAD, NC_PAD)        fc_last weight, transposed, 0-padded
    bl_ref   : (1, NC_PAD)    f32      fc_last bias, 0-padded
    out_ref  : (bn, NC_PAD)   f32      logits (lane-dense slab)
    feat_ref : (bn, DF_PAD)   f32      hidden feature (lane-dense slab)
    """
    x = x_ref[...]                                         # (bn, C_IN, L)

    # Fused AvgPool3d((2,7,7), stride=1) + mean over (T',H',W'):
    # a single weighted reduction over the flattened (T,H,W) lane axis.
    # VPU multiply + XLU lane-reduce; f32 accumulation even for bf16 x.
    pooled = jnp.sum(x * wred_ref[...], axis=-1)           # (bn, C_IN) f32

    # Dropout(p=0.2) in eval mode: identity.
    # Conv3d 1x1x1 == channel matmul; bias after the mean is exact.
    feat = jnp.dot(pooled.astype(wc_ref.dtype), wc_ref[...],
                   preferred_element_type=jnp.float32) + bc_ref[...]   # (bn, DF_PAD)

    # fc_last: Linear(DIM_FEAT, NUM_CLASSES).  Padded feat columns hit
    # zero-padded rows of wl, so the padding stays exact.
    out = jnp.dot(feat.astype(wl_ref.dtype), wl_ref[...],
                  preferred_element_type=jnp.float32) + bl_ref[...]    # (bn, NC_PAD)

    feat_ref[...] = feat
    out_ref[...] = out


@functools.partial(jax.jit, static_argnames=("compute_dtype", "batch_block"))
def model_wrapper_v6_forward(x_ncthw, conv_w, conv_b, fc_w, fc_b,
                             *, compute_dtype=jnp.float32, batch_block=None):
    """x_ncthw: (N, C_IN, T, H, W) float32 (PyTorch NCDHW layout).

    Returns (output, feat) with shapes (N, NUM_CLASSES), (N, DIM_FEAT),
    matching ModelWrapperV6.forward.  Use compute_dtype=jnp.bfloat16 at real
    S3D sizes (C=1024, dim_feat=400) — accumulation stays f32.
    """
    n, c, t, h, w = x_ncthw.shape
    # Guard the hardcoded pool fusion: spatial kernel must cover all of (H,W)
    # and the temporal kernel/stride are fixed at (2, 1).
    assert (h, w) == (7, 7), "fused pool assumes AvgPool3d spatial kernel == (7,7) == (H,W)"
    assert t >= 2, "AvgPool3d temporal kernel=2, stride=1 requires T >= 2"
    hw = h * w
    t_out = t - 2 + 1
    dim_feat, c_in = conv_w.shape[0], conv_w.shape[1]
    num_classes = fc_w.shape[0]
    assert c_in == c

    df_pad = _round_up(dim_feat, LANE)
    nc_pad = _round_up(num_classes, LANE)

    # Free contiguous reshape (no transpose, no extra HBM round trip).
    x_flat = x_ncthw.reshape(n, c, t * hw).astype(compute_dtype)

    # Fused pool+mean weights: frame s appears in counts[s] of the T_OUT
    # sliding (2,7,7) windows; every spatial position is in every window.
    counts = [0.0] * t
    for s in range(t_out):
        counts[s] += 1.0
        counts[s + 1] += 1.0
    wred = (jnp.repeat(jnp.asarray(counts, jnp.float32), hw)
            / (t_out * 2.0 * hw)).reshape(1, 1, t * hw)

    # Conv3d weight (DIM_FEAT, C_IN, 1, 1, 1) -> (C_IN, DF_PAD), zero-padded
    # so the kernel's output slabs are lane-dense (128-multiple) and exact.
    wc = jnp.zeros((c_in, df_pad), compute_dtype).at[:, :dim_feat].set(
        jnp.transpose(conv_w.reshape(dim_feat, c_in), (1, 0)).astype(compute_dtype))
    bc = jnp.zeros((1, df_pad), jnp.float32).at[:, :dim_feat].set(
        conv_b.reshape(1, dim_feat).astype(jnp.float32))
    # Linear weight (NUM_CLASSES, DIM_FEAT) -> (DF_PAD, NC_PAD), zero-padded.
    wl = jnp.zeros((df_pad, nc_pad), compute_dtype).at[:dim_feat, :num_classes].set(
        jnp.transpose(fc_w, (1, 0)).astype(compute_dtype))
    bl = jnp.zeros((1, nc_pad), jnp.float32).at[:, :num_classes].set(
        fc_b.reshape(1, num_classes).astype(jnp.float32))

    # Batch block: whole batch if its x slab stays under ~8 MiB (fits v7x's
    # 32 MiB scoped VMEM double-buffered, and v5e/v6e trivially); otherwise a
    # multiple-of-8 row block so the grid shards across v7x's 2 TensorCores.
    if batch_block is None:
        itemsize = jnp.dtype(compute_dtype).itemsize
        bytes_per_row = c * t * hw * itemsize
        budget = 8 * 1024 * 1024
        bn = max(1, min(n, budget // max(bytes_per_row, 1)))
        if bn < n:
            bn = max(8, (bn // 8) * 8)
    else:
        bn = batch_block
    bn = min(bn, n)
    grid_n = pl.cdiv(n, bn)

    itemsize = jnp.dtype(compute_dtype).itemsize
    flops = (2 * n * c * t * hw                 # weighted pool reduce
             + 2 * n * c * df_pad               # conv 1x1x1 matmul
             + 2 * n * df_pad * nc_pad)         # fc_last
    bytes_accessed = (x_flat.size * itemsize
                      + (wc.size + wl.size) * itemsize
                      + 4 * (wred.size + bc.size + bl.size
                             + n * nc_pad + n * df_pad))

    const2 = lambda i: (0, 0)
    const3 = lambda i: (0, 0, 0)

    out_pad, feat_pad = pl.pallas_call(
        _wrapper_v6_kernel,
        out_shape=(
            jax.ShapeDtypeStruct((n, nc_pad), jnp.float32),
            jax.ShapeDtypeStruct((n, df_pad), jnp.float32),
        ),
        grid=(grid_n,),
        in_specs=[
            pl.BlockSpec((bn, c, t * hw), lambda i: (i, 0, 0)),   # x tiles over batch
            pl.BlockSpec((1, 1, t * hw), const3),                 # weights: resident
            pl.BlockSpec((c, df_pad), const2),
            pl.BlockSpec((1, df_pad), const2),
            pl.BlockSpec((df_pad, nc_pad), const2),
            pl.BlockSpec((1, nc_pad), const2),
        ],
        out_specs=(
            pl.BlockSpec((bn, nc_pad), lambda i: (i, 0)),
            pl.BlockSpec((bn, df_pad), lambda i: (i, 0)),
        ),
        compiler_params=pltpu.CompilerParams(
            dimension_semantics=("parallel",),          # megacore sharding on v7x
            vmem_limit_bytes=32 * 1024 * 1024,
        ),
        cost_estimate=pl.CostEstimate(flops=flops, transcendentals=0,
                                      bytes_accessed=bytes_accessed),
    )(x_flat, wred, wc, bc, wl, bl)

    # Slice the lane-padding back off (cheap, fused under the same jit).
    return out_pad[:, :num_classes], feat_pad[:, :dim_feat]


def _reference(x_ncthw, conv_w, conv_b, fc_w, fc_b):
    """Pure-JAX reference mirroring the PyTorch ops (sanity check)."""
    x = x_ncthw
    # AvgPool3d((2,7,7), stride=1) on NCDHW
    win = x[:, :, :-1] + x[:, :, 1:]                                # (N,C,T_OUT,H,W)
    pooled = jnp.sum(win, axis=(3, 4), keepdims=True) / (2.0 * HW)  # (N,C,T_OUT,1,1)
    # Dropout (eval) identity, Conv3d 1x1x1
    w2 = conv_w.reshape(DIM_FEAT, C_IN)
    y = jnp.einsum("ncthw,oc->nothw", pooled, w2) + conv_b[None, :, None, None, None]
    feat = jnp.mean(y, axis=(2, 3, 4))                              # (N, DIM_FEAT)
    out = feat @ fc_w.T + fc_b                                      # (N, NUM_CLASSES)
    return out, feat


if __name__ == "__main__":
    key = jax.random.PRNGKey(0)
    k_x, k_cw, k_cb, k_lw, k_lb = jax.random.split(key, 5)

    x = jax.random.normal(k_x, (N, C_IN, T, H, W), dtype=jnp.float32)
    conv_w = jax.random.normal(k_cw, (DIM_FEAT, C_IN, 1, 1, 1), jnp.float32) * 0.1
    conv_b = jax.random.normal(k_cb, (DIM_FEAT,), jnp.float32) * 0.1
    fc_w = jax.random.normal(k_lw, (NUM_CLASSES, DIM_FEAT), jnp.float32) * 0.1
    fc_b = jax.random.normal(k_lb, (NUM_CLASSES,), jnp.float32) * 0.1

    # f32 path (toy sizes): exact against the reference.
    out, feat = model_wrapper_v6_forward(x, conv_w, conv_b, fc_w, fc_b)
    jax.block_until_ready((out, feat))

    ref_out, ref_feat = _reference(x, conv_w, conv_b, fc_w, fc_b)
    assert out.shape == (N, NUM_CLASSES) and feat.shape == (N, DIM_FEAT)
    assert jnp.allclose(feat, ref_feat, atol=1e-4, rtol=1e-4)
    assert jnp.allclose(out, ref_out, atol=1e-4, rtol=1e-4)

    # bf16 compute path (what real S3D sizes would use): compile, run, loose check.
    out_bf, feat_bf = model_wrapper_v6_forward(x, conv_w, conv_b, fc_w, fc_b,
                                               compute_dtype=jnp.bfloat16)
    jax.block_until_ready((out_bf, feat_bf))
    assert jnp.allclose(out_bf, ref_out, atol=1e-1, rtol=1e-1)
    assert jnp.allclose(feat_bf, ref_feat, atol=1e-1, rtol=1e-1)

    print("KERNEL_OK")
</pallas_src>

<mosaic_0001>
module attributes {stable_mosaic.version = 11 : i64} {
  func.func @_wrapper_v6_kernel(%arg0: i32, %arg1: memref<2x16x196xf32, #tpu.memory_space<vmem>>, %arg2: memref<1x1x196xf32, #tpu.memory_space<vmem>>, %arg3: memref<16x128xf32, #tpu.memory_space<vmem>>, %arg4: memref<1x128xf32, #tpu.memory_space<vmem>>, %arg5: memref<128x128xf32, #tpu.memory_space<vmem>>, %arg6: memref<1x128xf32, #tpu.memory_space<vmem>>, %arg7: memref<2x128xf32, #tpu.memory_space<vmem>>, %arg8: memref<2x128xf32, #tpu.memory_space<vmem>>) attributes {dimension_semantics = [#tpu.dimension_semantics<parallel>], iteration_bounds = array<i64: 1>, scalar_prefetch = 0 : i64, scratch_operands = 0 : i64, tpu.core_type = #tpu.core_type<tc>, window_params = [{transform_indices = @transform_0, window_bounds = array<i64: 2, 16, 196>}, {pipeline_mode = #tpu.pipeline_mode<synchronous>, transform_indices = @transform_1, window_bounds = array<i64: 1, 1, 196>}, {pipeline_mode = #tpu.pipeline_mode<synchronous>, transform_indices = @transform_2, window_bounds = array<i64: 16, 128>}, {pipeline_mode = #tpu.pipeline_mode<synchronous>, transform_indices = @transform_3, window_bounds = array<i64: 1, 128>}, {pipeline_mode = #tpu.pipeline_mode<synchronous>, transform_indices = @transform_4, window_bounds = array<i64: 128, 128>}, {pipeline_mode = #tpu.pipeline_mode<synchronous>, transform_indices = @transform_5, window_bounds = array<i64: 1, 128>}, {transform_indices = @transform_6, window_bounds = array<i64: 2, 128>}, {transform_indices = @transform_7, window_bounds = array<i64: 2, 128>}]} {
    %c0 = arith.constant 0 : index
    %c0_0 = arith.constant 0 : index
    %c0_1 = arith.constant 0 : index
    %0 = vector.load %arg1[%c0, %c0_0, %c0_1] : memref<2x16x196xf32, #tpu.memory_space<vmem>>, vector<2x16x196xf32>
    %c0_2 = arith.constant 0 : index
    %c0_3 = arith.constant 0 : index
    %c0_4 = arith.constant 0 : index
    %1 = vector.load %arg2[%c0_2, %c0_3, %c0_4] : memref<1x1x196xf32, #tpu.memory_space<vmem>>, vector<1x1x196xf32>
    %2 = vector.broadcast %1 : vector<1x1x196xf32> to vector<2x16x196xf32>
    %3 = arith.mulf %0, %2 : vector<2x16x196xf32>
    %cst = arith.constant dense<0.000000e+00> : vector<2x16xf32>
    %4 = vector.multi_reduction <add>, %3, %cst [2] : vector<2x16x196xf32> to vector<2x16xf32>
    %c0_5 = arith.constant 0 : index
    %c0_6 = arith.constant 0 : index
    %5 = vector.load %arg3[%c0_5, %c0_6] : memref<16x128xf32, #tpu.memory_space<vmem>>, vector<16x128xf32>
    %cst_7 = arith.constant dense<0.000000e+00> : vector<2x128xf32>
    %6 = tpu.matmul %4, %5, %cst_7 {dimension_numbers = #tpu.dot_dimension_numbers<[1], [0], [0], [1], [0, 0, 1, 1], [], []>} : vector<2x16xf32>, vector<16x128xf32>, vector<2x128xf32> -> vector<2x128xf32>
    %c0_8 = arith.constant 0 : index
    %c0_9 = arith.constant 0 : index
    %7 = vector.load %arg4[%c0_8, %c0_9] : memref<1x128xf32, #tpu.memory_space<vmem>>, vector<1x128xf32>
    %8 = vector.broadcast %7 : vector<1x128xf32> to vector<2x128xf32>
    %9 = arith.addf %6, %8 : vector<2x128xf32>
    %c0_10 = arith.constant 0 : index
    %c0_11 = arith.constant 0 : index
    %10 = vector.load %arg5[%c0_10, %c0_11] : memref<128x128xf32, #tpu.memory_space<vmem>>, vector<128x128xf32>
    %cst_12 = arith.constant dense<0.000000e+00> : vector<2x128xf32>
    %11 = tpu.matmul %9, %10, %cst_12 {dimension_numbers = #tpu.dot_dimension_numbers<[1], [0], [0], [1], [0, 0, 1, 1], [], []>} : vector<2x128xf32>, vector<128x128xf32>, vector<2x128xf32> -> vector<2x128xf32>
    %c0_13 = arith.constant 0 : index
    %c0_14 = arith.constant 0 : index
    %12 = vector.load %arg6[%c0_13, %c0_14] : memref<1x128xf32, #tpu.memory_space<vmem>>, vector<1x128xf32>
    %13 = vector.broadcast %12 : vector<1x128xf32> to vector<2x128xf32>
    %14 = arith.addf %11, %13 : vector<2x128xf32>
    %c0_15 = arith.constant 0 : index
    %c0_16 = arith.constant 0 : index
    %15 = vector.load %arg8[%c0_15, %c0_16] : memref<2x128xf32, #tpu.memory_space<vmem>>, vector<2x128xf32>
    tpu.vector_store %arg8[%c0_15, %c0_16], %9 {strides = array<i32>} : memref<2x128xf32, #tpu.memory_space<vmem>>, vector<2x128xf32>,
    %c0_17 = arith.constant 0 : index
    %c0_18 = arith.constant 0 : index
    %16 = vector.load %arg7[%c0_17, %c0_18] : memref<2x128xf32, #tpu.memory_space<vmem>>, vector<2x128xf32>
    tpu.vector_store %arg7[%c0_17, %c0_18], %14 {strides = array<i32>} : memref<2x128xf32, #tpu.memory_space<vmem>>, vector<2x128xf32>,
    return
  }
  func.func @transform_0(%arg0: i32) -> (i32, i32, i32) {
    %c0_i32 = arith.constant 0 : i32
    %c0_i32_0 = arith.constant 0 : i32
    %c0_i32_1 = arith.constant 0 : i32
    return %arg0, %c0_i32, %c0_i32_0 : i32, i32, i32
  }
  func.func @transform_1(%arg0: i32) -> (i32, i32, i32) {
    %c0_i32 = arith.constant 0 : i32
    %c0_i32_0 = arith.constant 0 : i32
    %c0_i32_1 = arith.constant 0 : i32
    %c0_i32_2 = arith.constant 0 : i32
    return %c0_i32, %c0_i32_0, %c0_i32_1 : i32, i32, i32
  }
  func.func @transform_2(%arg0: i32) -> (i32, i32) {
    %c0_i32 = arith.constant 0 : i32
    %c0_i32_0 = arith.constant 0 : i32
    %c0_i32_1 = arith.constant 0 : i32
    return %c0_i32, %c0_i32_0 : i32, i32
  }
  func.func @transform_3(%arg0: i32) -> (i32, i32) {
    %c0_i32 = arith.constant 0 : i32
    %c0_i32_0 = arith.constant 0 : i32
    %c0_i32_1 = arith.constant 0 : i32
    return %c0_i32, %c0_i32_0 : i32, i32
  }
  func.func @transform_4(%arg0: i32) -> (i32, i32) {
    %c0_i32 = arith.constant 0 : i32
    %c0_i32_0 = arith.constant 0 : i32
    %c0_i32_1 = arith.constant 0 : i32
    return %c0_i32, %c0_i32_0 : i32, i32
  }
  func.func @transform_5(%arg0: i32) -> (i32, i32) {
    %c0_i32 = arith.constant 0 : i32
    %c0_i32_0 = arith.constant 0 : i32
    %c0_i32_1 = arith.constant 0 : i32
    return %c0_i32, %c0_i32_0 : i32, i32
  }
  func.func @transform_6(%arg0: i32) -> (i32, i32) {
    %c0_i32 = arith.constant 0 : i32
    %c0_i32_0 = arith.constant 0 : i32
    return %arg0, %c0_i32 : i32, i32
  }
  func.func @transform_7(%arg0: i32) -> (i32, i32) {
    %c0_i32 = arith.constant 0 : i32
    %c0_i32_0 = arith.constant 0 : i32
    return %arg0, %c0_i32 : i32, i32
  }
}

</mosaic_0001>

<llo_original>
// kernel: model_wrapper_v6_forward.1
$region0: #{model_wrapper_v6_forward.1}
  #allocation0 [shape = 'u32[]', space=smem, size = 0x4, offset = 0x4, fixed_abs, tag = 'smem constant byte address 0x4 - core index']
  #allocation1 [shape = 'u32[72,128]{1,0:T(1,128)}', space=vmem, size = 0x9000, scoped, tag = 'internal scratch']
  %s0 = inlined_call_operand.vmem [shape: f32[2,16,196], index: 0, kind: input, shape index: {}]
  %s1 = inlined_call_operand.vmem [shape: f32[1,1,196], index: 1, kind: input, shape index: {}]
  %s2 = inlined_call_operand.vmem [shape: f32[16,128], index: 2, kind: input, shape index: {}]
  %s3 = inlined_call_operand.vmem [shape: f32[1,128], index: 3, kind: input, shape index: {}]
  %s4 = inlined_call_operand.vmem [shape: f32[128,128], index: 4, kind: input, shape index: {}]
  %s5 = inlined_call_operand.vmem [shape: f32[1,128], index: 5, kind: input, shape index: {}]
  %s6 = inlined_call_operand.hbm [shape: f32[2,128], index: 6, kind: output, shape index: {0}]
  %s7 = inlined_call_operand.hbm [shape: f32[2,128], index: 7, kind: output, shape index: {1}]
  %8 = xla_tuple %s6, %s7
  %s9 = sld [smem:[#allocation0]]
  $region42: #{model_wrapper_v6_forward.1} parent=0
    _
  %s11 = ssub.s32 1, %s9
  %s12 = scalar_select 0, %s11, %s9
  $region1: #{model_wrapper_v6_forward.1} parent=0
    #allocation2 [shape = 'u8[1024]{0}', space=vmem, size = 0x400, scoped, tag = 'output window, operand 0, single buffered']
    #allocation3 [shape = 's32[1]{0}', space=sflag, size = 0x4, scoped, tag = 'scoped memory for model_wrapper_v6_forward.1']
    #allocation4 [shape = 'u8[1024]{0}', space=vmem, size = 0x400, scoped, tag = 'output window, operand 1, single buffered']
    #allocation5 [shape = 's32[1]{0}', space=sflag, size = 0x4, scoped, tag = 'scoped memory for model_wrapper_v6_forward.1']
    %13 = vsyncpa [#allocation3], 0
    %14 = vsyncpa [#allocation5], 0
    // Predicated region
    $region2: #{model_wrapper_v6_forward.1} parent=1 // pred_check
      _
    $region3: #{model_wrapper_v6_forward.1} parent=1 // pred_check_branch
      %16 = sbr.rel (0) target = $region5
    $region4: #{model_wrapper_v6_forward.1} parent=1 // pred_region
      _
    $region5: #{model_wrapper_v6_forward.1} parent=1 // pred_fallthru
      _
    // Predicated region
    $region6: #{model_wrapper_v6_forward.1} parent=1 // pred_check
      _
    $region7: #{model_wrapper_v6_forward.1} parent=1 // pred_check_branch
      %18 = sbr.rel (0) target = $region9
    $region8: #{model_wrapper_v6_forward.1} parent=1 // pred_region
      _
    $region9: #{model_wrapper_v6_forward.1} parent=1 // pred_fallthru
      _
    // Predicated region
    $region10: #{model_wrapper_v6_forward.1} parent=1 // pred_check
      _
    $region11: #{model_wrapper_v6_forward.1} parent=1 // pred_check_branch
      %20 = sbr.rel (0) target = $region13
    $region12: #{model_wrapper_v6_forward.1} parent=1 // pred_region
      _
    $region13: #{model_wrapper_v6_forward.1} parent=1 // pred_fallthru
      _
    // Predicated region
    $region14: #{model_wrapper_v6_forward.1} parent=1 // pred_check
      _
    $region15: #{model_wrapper_v6_forward.1} parent=1 // pred_check_branch
      %22 = sbr.rel (0) target = $region17
    $region16: #{model_wrapper_v6_forward.1} parent=1 // pred_region
      _
    $region17: #{model_wrapper_v6_forward.1} parent=1 // pred_fallthru
      _
    // Predicated region
    $region18: #{model_wrapper_v6_forward.1} parent=1 // pred_check
      _
    $region19: #{model_wrapper_v6_forward.1} parent=1 // pred_check_branch
      %24 = sbr.rel (0) target = $region21
    $region20: #{model_wrapper_v6_forward.1} parent=1 // pred_region
      _
    $region21: #{model_wrapper_v6_forward.1} parent=1 // pred_fallthru
      _
    // Predicated region
    $region22: #{model_wrapper_v6_forward.1} parent=1 // pred_check
      _
    $region23: #{model_wrapper_v6_forward.1} parent=1 // pred_check_branch
      %26 = sbr.rel (0) target = $region25
    $region24: #{model_wrapper_v6_forward.1} parent=1 // pred_region
      _
    $region25: #{model_wrapper_v6_forward.1} parent=1 // pred_fallthru
      _
    %v27 = vld [vmem:[%s0] sm:$0xff]
    %v28 = vld [vmem:[%s0 + $0x8] sm:$0xff]
    %v29 = vld [vmem:[%s0 + $0x10] sm:$0xff]
    %v30 = vld [vmem:[%s0 + $0x18] sm:$0xff]
    %v31 = vld [vmem:[%s0 + $0x20] sm:$0xff]
    %v32 = vld [vmem:[%s0 + $0x28] sm:$0xff]
    %v33 = vld [vmem:[%s0 + $0x30] sm:$0xff]
    %v34 = vld [vmem:[%s0 + $0x38] sm:$0xff]
    %v35 = vld [vmem:[%s1] sm:$0x3]
    %v37 = vperm.slane %v35, 0
    %v38 = vperm.slane %v35, 1
    %v41 = vmul.f32 %v27, %v37
    %v42 = vmul.f32 %v28, %v38
    %v43 = vmul.f32 %v29, %v37
    %v44 = vmul.f32 %v30, %v38
    %v45 = vmul.f32 %v31, %v37
    %v46 = vmul.f32 %v32, %v38
    %v47 = vmul.f32 %v33, %v37
    %v48 = vmul.f32 %v34, %v38
    %vm49 = vcmask 556032
    %v50 = vsel %vm49, %v42, 0.0
    %v51 = vadd.f32 %v41, %v50
    %52 = vadd.xlane.f32.xlu0 %v51
    %v53 = vpop.xlane.xlu0 %52
    %v54 = vsel %vm49, %v44, 0.0
    %v55 = vadd.f32 %v43, %v54
    %56 = vadd.xlane.f32.xlu0 %v55
    %v57 = vpop.xlane.xlu0 %56
    %v58 = vsel %vm49, %v46, 0.0
    %v59 = vadd.f32 %v45, %v58
    %60 = vadd.xlane.f32.xlu0 %v59
    %v61 = vpop.xlane.xlu0 %60
    %v62 = vsel %vm49, %v48, 0.0
    %v63 = vadd.f32 %v47, %v62
    %64 = vadd.xlane.f32.xlu0 %v63
    %v65 = vpop.xlane.xlu0 %64
    %v66 = vld [vmem:[%s2] sm:$0xff]
    %v67 = vld [vmem:[%s2 + $0x8] sm:$0xff]
    %v68 = vld [vmem:[%s3] sm:$0x1]
    %v70 = vperm.slane %v68, 0
    %v76 = vlaneseq
    %v77 = vand.u32 %v76, 127
    %v78 = vperm.slane %v53, %v77
    %v79 = vadd.s32 %v77, 4294967288
    %v80 = vperm.slane %v57, %v79
    %vm81 = vcmask 130112
    %v82 = vsel %vm81, %v80, %v78
    %v83 = vperm.slane %v61, %v77
    %v84 = vperm.slane %v65, %v79
    %v85 = vsel %vm81, %v84, %v83
    %vm86 = vcmask 1041409
    %v87 = vsel %vm86, %v85, %v82
    %vm88 = vcmask 130048
    %v89 = vsel %vm88, %v87, 0
    %91 = vmatpush.msra.mxu0 0.0
    %92 = vmatpush.msra.mxu0 0.0
    %93 = vmatpush.msra.mxu0 0.0
    %94 = vmatpush.msra.mxu0 0.0
    %95 = vmatpush.msra.mxu0 0.0
    %96 = vmatpush.msra.mxu0 0.0
    %97 = vmatpush.msra.mxu0 0.0
    %98 = vmatpush.msra.mxu0 0.0
    %99 = vmatpush.msra.mxu0 0.0
    %100 = vmatpush.msra.mxu0 0.0
    %101 = vmatpush.msra.mxu0 0.0
    %102 = vmatpush.msra.mxu0 0.0
    %103 = vmatpush.msra.mxu0 0.0
    %104 = vmatpush.msra.mxu0 0.0
    %105 = vmatpush.msra.mxu0 %v67
    %106 = vmatpush.msra.mxu0 %v66
    %107 = vmatmul.f32.gmra.mxu0 %v89
    %v108 = vpop.f32.mrf.mxu0
    %v109 = vadd.f32 %v70, %v108
    %110 = vdwg.mxu0
    %v111 = vld [vmem:[%s4] sm:$0xff]
    %v112 = vld [vmem:[%s4 + $0x8] sm:$0xff]
    %v113 = vld [vmem:[%s4 + $0x10] sm:$0xff]
    %v114 = vld [vmem:[%s4 + $0x18] sm:$0xff]
    %v115 = vld [vmem:[%s4 + $0x20] sm:$0xff]
    %v116 = vld [vmem:[%s4 + $0x28] sm:$0xff]
    %v117 = vld [vmem:[%s4 + $0x30] sm:$0xff]
    %v118 = vld [vmem:[%s4 + $0x38] sm:$0xff]
    %v119 = vld [vmem:[%s4 + $0x40] sm:$0xff]
    %v120 = vld [vmem:[%s4 + $0x48] sm:$0xff]
    %v121 = vld [vmem:[%s4 + $0x50] sm:$0xff]
    %v122 = vld [vmem:[%s4 + $0x58] sm:$0xff]
    %v123 = vld [vmem:[%s4 + $0x60] sm:$0xff]
    %v124 = vld [vmem:[%s4 + $0x68] sm:$0xff]
    %v125 = vld [vmem:[%s4 + $0x70] sm:$0xff]
    %v126 = vld [vmem:[%s4 + $0x78] sm:$0xff]
    %v127 = vld [vmem:[%s5] sm:$0x1]
    %v129 = vperm.slane %v127, 0
    %131 = vmatpush.msra.mxu0 %v126
    %132 = vmatpush.msra.mxu0 %v125
    %133 = vmatpush.msra.mxu0 %v124
    %134 = vmatpush.msra.mxu0 %v123
    %135 = vmatpush.msra.mxu0 %v122
    %136 = vmatpush.msra.mxu0 %v121
    %137 = vmatpush.msra.mxu0 %v120
    %138 = vmatpush.msra.mxu0 %v119
    %139 = vmatpush.msra.mxu0 %v118
    %140 = vmatpush.msra.mxu0 %v117
    %141 = vmatpush.msra.mxu0 %v116
    %142 = vmatpush.msra.mxu0 %v115
    %143 = vmatpush.msra.mxu0 %v114
    %144 = vmatpush.msra.mxu0 %v113
    %145 = vmatpush.msra.mxu0 %v112
    %146 = vmatpush.msra.mxu0 %v111
    %147 = vmatmul.f32.gmra.mxu0 %v109
    %v148 = vpop.f32.mrf.mxu0
    %v149 = vadd.f32 %v129, %v148
    %150 = vdwg.mxu0
    %151 = vst [vmem:[#allocation4] sm:$0x3] %v109
    %152 = vst [vmem:[#allocation2] sm:$0x3] %v149
    // Predicated region
    $region26: #{model_wrapper_v6_forward.1} parent=1 // pred_check
      _
    $region27: #{model_wrapper_v6_forward.1} parent=1 // pred_check_branch
      %154 = sbr.rel (0) target = $region29
    $region28: #{model_wrapper_v6_forward.1} parent=1 // pred_region
      %156 = vsyncadd [#allocation3], 0
      %s158 = sshll.u32 [#allocation2], 4
      %s159 = int_to_ptr.vmem [resolvable:$true] %s158
      %s160 = sshll.u32 %s6, 4
      %s161 = int_to_ptr.hbm [resolvable:$true] %s160
      %163 = dma.vmem_to_hbm [thread:$0]  %s159, 32, %s161, [#allocation3]
    $region29: #{model_wrapper_v6_forward.1} parent=1 // pred_fallthru
      _
    // Predicated region
    $region30: #{model_wrapper_v6_forward.1} parent=1 // pred_check
      _
    $region31: #{model_wrapper_v6_forward.1} parent=1 // pred_check_branch
      %165 = sbr.rel (0) target = $region33
    $region32: #{model_wrapper_v6_forward.1} parent=1 // pred_region
      %167 = vsyncadd [#allocation5], 0
      %s169 = sshll.u32 [#allocation4], 4
      %s170 = int_to_ptr.vmem [resolvable:$true] %s169
      %s171 = sshll.u32 %s7, 4
      %s172 = int_to_ptr.hbm [resolvable:$true] %s171
      %174 = dma.vmem_to_hbm [thread:$0]  %s170, 32, %s172, [#allocation5]
    $region33: #{model_wrapper_v6_forward.1} parent=1 // pred_fallthru
      _
    // Predicated region
    $region34: #{model_wrapper_v6_forward.1} parent=1 // pred_check
      _
    $region35: #{model_wrapper_v6_forward.1} parent=1 // pred_check_branch
      %176 = sbr.rel (0) target = $region37
    $region36: #{model_wrapper_v6_forward.1} parent=1 // pred_region
      %178 = dma.done [#allocation3], 32
    $region37: #{model_wrapper_v6_forward.1} parent=1 // pred_fallthru
      _
    // Predicated region
    $region38: #{model_wrapper_v6_forward.1} parent=1 // pred_check
      _
    $region39: #{model_wrapper_v6_forward.1} parent=1 // pred_check_branch
      %180 = sbr.rel (0) target = $region41
    $region40: #{model_wrapper_v6_forward.1} parent=1 // pred_region
      %182 = dma.done [#allocation5], 32
    $region41: #{model_wrapper_v6_forward.1} parent=1 // pred_fallthru
      _
    %183 = vsyncpa [#allocation3], 1
    %184 = vsyncpa [#allocation5], 1

</llo_original>
